<compile_context>
chip_gen: v7x
topology: tpu7x:2x2x1
jax: 0.10.0
libtpu: 0.0.40
codegen_flags: <defaults>
</compile_context>

<pallas_src>
import functools
import math

import jax
import jax.numpy as jnp
from jax.experimental import pallas as pl
from jax.experimental.pallas import tpu as pltpu


_PARALLEL = pltpu.CompilerParams(dimension_semantics=("parallel",))
_ARBITRARY = pltpu.CompilerParams(dimension_semantics=("arbitrary",))


def _const2d(shape):
    return pl.BlockSpec(shape, lambda b: (0, 0))


# ---------------------------------------------------------------------------
# Pallas kernels
# ---------------------------------------------------------------------------

def _embed_kernel(p_ref, w_ref, b_ref, cls_ref, pos_ref, o_ref, *, s_real, s_pad):
    """Patch-embed matmul + CLS prepend + pos-embed add for one image per grid step."""
    patches = p_ref[0].astype(jnp.bfloat16)                              # (N, P)
    tok = jnp.dot(patches, w_ref[...].astype(jnp.bfloat16),
                  preferred_element_type=jnp.float32) + b_ref[...]       # (N, E) f32
    full = jnp.concatenate([cls_ref[...], tok], axis=0) + pos_ref[...]   # (S_real, E)
    if s_pad > s_real:                                                   # pad sublanes once
        pad = jnp.zeros((s_pad - s_real, full.shape[1]), jnp.float32)
        full = jnp.concatenate([full, pad], axis=0)
    o_ref[0] = full                                                      # lane-dense store


def _encoder_layer_kernel(x_ref, wqkv_ref, bqkv_ref, wo_ref, bo_ref,
                          ln1g_ref, ln1b_ref, w1_ref, b1_ref, w2_ref, b2_ref,
                          ln2g_ref, ln2b_ref, o_ref, *, n_heads, s_real, eps):
    """Fully fused post-norm transformer encoder layer (one image per grid step).

    Fused QKV -> multi-head attention (key-masked for padded token rows) ->
    output projection -> LN1 -> FFN (hidden stays in VMEM/vregs) -> LN2.
    Matmuls use bf16 operands with f32 accumulation; softmax/LN stay f32.
    """
    x = x_ref[0]                                   # (S_pad, E) f32
    S, E = x.shape
    hd = E // n_heads
    scale = 1.0 / math.sqrt(hd)

    # fused QKV projection (one MXU pass instead of three)
    qkv = jnp.dot(x.astype(jnp.bfloat16), wqkv_ref[...].astype(jnp.bfloat16),
                  preferred_element_type=jnp.float32) + bqkv_ref[...]
    q = qkv[:, :E] * scale                         # fold 1/sqrt(hd) into q
    k = qkv[:, E:2 * E]
    v = qkv[:, 2 * E:]

    if s_real < S:                                 # static key mask for padded rows
        kidx = jax.lax.broadcasted_iota(jnp.int32, (S, S), 1)
        key_mask = kidx < s_real
    else:
        key_mask = None

    head_outs = []
    for h in range(n_heads):                       # static unroll, torch-style head split
        sl = slice(h * hd, (h + 1) * hd)
        qh = q[:, sl].astype(jnp.bfloat16)
        kh = k[:, sl].astype(jnp.bfloat16)
        vh = v[:, sl].astype(jnp.bfloat16)
        sc = jax.lax.dot_general(qh, kh, (((1,), (1,)), ((), ())),
                                 preferred_element_type=jnp.float32)     # (S, S)
        if key_mask is not None:
            sc = jnp.where(key_mask, sc, jnp.float32(-1e30))
        sc = sc - jnp.max(sc, axis=-1, keepdims=True)
        p = jnp.exp(sc)
        p = p * pl.reciprocal(jnp.sum(p, axis=-1, keepdims=True), approx=True)
        head_outs.append(jnp.dot(p.astype(jnp.bfloat16), vh,
                                 preferred_element_type=jnp.float32))    # (S, hd)
    attn = jnp.concatenate(head_outs, axis=-1)                           # (S, E)
    attn = jnp.dot(attn.astype(jnp.bfloat16), wo_ref[...].astype(jnp.bfloat16),
                   preferred_element_type=jnp.float32) + bo_ref[...]

    # post-norm residual 1
    y = x + attn
    mu = jnp.mean(y, axis=-1, keepdims=True)
    var = jnp.mean(jnp.square(y - mu), axis=-1, keepdims=True)
    y = (y - mu) * jax.lax.rsqrt(var + eps) * ln1g_ref[...] + ln1b_ref[...]

    # FFN -- the (S, mlp_dim) hidden never leaves VMEM
    h1 = jnp.dot(y.astype(jnp.bfloat16), w1_ref[...].astype(jnp.bfloat16),
                 preferred_element_type=jnp.float32) + b1_ref[...]
    h1 = jnp.maximum(h1, 0.0)
    ff = jnp.dot(h1.astype(jnp.bfloat16), w2_ref[...].astype(jnp.bfloat16),
                 preferred_element_type=jnp.float32) + b2_ref[...]

    # post-norm residual 2
    z = y + ff
    mu = jnp.mean(z, axis=-1, keepdims=True)
    var = jnp.mean(jnp.square(z - mu), axis=-1, keepdims=True)
    z = (z - mu) * jax.lax.rsqrt(var + eps) * ln2g_ref[...] + ln2b_ref[...]

    o_ref[0] = z                                   # single lane-dense store per step


def _layernorm_kernel(x_ref, g_ref, b_ref, o_ref, *, eps):
    x = x_ref[...]
    mu = jnp.mean(x, axis=-1, keepdims=True)
    var = jnp.mean(jnp.square(x - mu), axis=-1, keepdims=True)
    o_ref[...] = (x - mu) * jax.lax.rsqrt(var + eps) * g_ref[...] + b_ref[...]


def _head_kernel(x_ref, w1_ref, b1_ref, w2_ref, b2_ref, w3_ref, b3_ref, wl_ref,
                 o_ref, *, eps):
    """DINO-style projection head, fully fused: MLP(GELU) + L2 norm + weight-normed linear."""
    def mm(a, w_ref_):
        return jnp.dot(a.astype(jnp.bfloat16), w_ref_[...].astype(jnp.bfloat16),
                       preferred_element_type=jnp.float32)

    x = x_ref[...]
    h = jax.nn.gelu(mm(x, w1_ref) + b1_ref[...], approximate=True)
    h = jax.nn.gelu(mm(h, w2_ref) + b2_ref[...], approximate=True)
    z = mm(h, w3_ref) + b3_ref[...]
    z = z * jax.lax.rsqrt(jnp.sum(z * z, axis=-1, keepdims=True) + eps)
    o_ref[...] = mm(z, wl_ref)


# ---------------------------------------------------------------------------
# pallas_call wrappers
# ---------------------------------------------------------------------------

def embed_tokens(patches, w, b, cls_tok, pos, s_pad):
    B, N, P = patches.shape
    E = w.shape[1]
    s_real = N + 1
    return pl.pallas_call(
        functools.partial(_embed_kernel, s_real=s_real, s_pad=s_pad),
        grid=(B,),
        in_specs=[
            pl.BlockSpec((1, N, P), lambda bi: (bi, 0, 0)),
            _const2d((P, E)),
            _const2d((1, E)),
            _const2d((1, E)),
            _const2d((s_real, E)),
        ],
        out_specs=pl.BlockSpec((1, s_pad, E), lambda bi: (bi, 0, 0)),
        out_shape=jax.ShapeDtypeStruct((B, s_pad, E), jnp.float32),
        compiler_params=_PARALLEL,
    )(patches, w, b.reshape(1, E), cls_tok, pos)


def encoder_layer(x, p, n_heads, s_real):
    B, S, E = x.shape
    F = p["w1"].shape[1]
    return pl.pallas_call(
        functools.partial(_encoder_layer_kernel, n_heads=n_heads,
                          s_real=s_real, eps=1e-5),
        grid=(B,),
        in_specs=[
            pl.BlockSpec((1, S, E), lambda bi: (bi, 0, 0)),
            _const2d((E, 3 * E)), _const2d((1, 3 * E)),
            _const2d((E, E)), _const2d((1, E)),
            _const2d((1, E)), _const2d((1, E)),
            _const2d((E, F)), _const2d((1, F)),
            _const2d((F, E)), _const2d((1, E)),
            _const2d((1, E)), _const2d((1, E)),
        ],
        out_specs=pl.BlockSpec((1, S, E), lambda bi: (bi, 0, 0)),
        out_shape=jax.ShapeDtypeStruct((B, S, E), jnp.float32),
        compiler_params=_PARALLEL,
    )(x, p["wqkv"], p["bqkv"].reshape(1, -1), p["wo"], p["bo"].reshape(1, -1),
      p["ln1_g"].reshape(1, -1), p["ln1_b"].reshape(1, -1),
      p["w1"], p["b1"].reshape(1, -1), p["w2"], p["b2"].reshape(1, -1),
      p["ln2_g"].reshape(1, -1), p["ln2_b"].reshape(1, -1))


def layernorm(x, g, b, eps=1e-5):
    M, E = x.shape
    return pl.pallas_call(
        functools.partial(_layernorm_kernel, eps=eps),
        grid=(1,),
        in_specs=[_const2d((M, E)), _const2d((1, E)), _const2d((1, E))],
        out_specs=_const2d((M, E)),
        out_shape=jax.ShapeDtypeStruct((M, E), jnp.float32),
        compiler_params=_ARBITRARY,
    )(x, g.reshape(1, E), b.reshape(1, E))


def head_forward(x, hp):
    M, D = x.shape
    Hd = hp["w1"].shape[1]
    Bt = hp["w3"].shape[1]
    O = hp["w_last"].shape[1]
    return pl.pallas_call(
        functools.partial(_head_kernel, eps=1e-12),
        grid=(1,),
        in_specs=[
            _const2d((M, D)),
            _const2d((D, Hd)), _const2d((1, Hd)),
            _const2d((Hd, Hd)), _const2d((1, Hd)),
            _const2d((Hd, Bt)), _const2d((1, Bt)),
            _const2d((Bt, O)),
        ],
        out_specs=_const2d((M, O)),
        out_shape=jax.ShapeDtypeStruct((M, O), jnp.float32),
        compiler_params=_ARBITRARY,
    )(x, hp["w1"], hp["b1"].reshape(1, -1), hp["w2"], hp["b2"].reshape(1, -1),
      hp["w3"], hp["b3"].reshape(1, -1), hp["w_last"])


# ---------------------------------------------------------------------------
# Glue (reshapes / constants — no hot-path compute)
# ---------------------------------------------------------------------------

def _patchify(x, p):
    B, C, H, W = x.shape
    x = x.reshape(B, C, H // p, p, W // p, p)
    x = x.transpose(0, 2, 4, 3, 5, 1)
    return x.reshape(B, (H // p) * (W // p), p * p * C)


def _sinusoid_pos_embed(n, dim):
    pos = jnp.arange(n, dtype=jnp.float32)[:, None]
    idx = jnp.arange(dim // 2, dtype=jnp.float32)[None, :]
    angle = pos / jnp.power(10000.0, 2.0 * idx / dim)
    return jnp.concatenate([jnp.sin(angle), jnp.cos(angle)], axis=-1) * 0.02


def _init_linear(key, fan_in, fan_out, std=0.02):
    kw, kb = jax.random.split(key)
    w = jax.random.normal(kw, (fan_in, fan_out), jnp.float32) * std
    b = jax.random.normal(kb, (fan_out,), jnp.float32) * std
    return w, b


class Identity:
    def __call__(self, x):
        return x


# ---------------------------------------------------------------------------
# Pallas-backed backbone (ViT-style) and head (DINO-style) passed into the wrapper
# ---------------------------------------------------------------------------

class PallasViTBackbone:
    def __init__(self, key, patch_size=4, in_chans=3, embed_dim=128, depth=2,
                 n_heads=4, mlp_dim=256):
        assert embed_dim % n_heads == 0
        self.patch_size = patch_size
        self.in_chans = in_chans
        self.embed_dim = embed_dim
        self.n_heads = n_heads
        keys = iter(jax.random.split(key, 2 + 4 * depth))
        P = patch_size * patch_size * in_chans
        self.patch_w, self.patch_b = _init_linear(next(keys), P, embed_dim)
        self.cls_token = jax.random.normal(next(keys), (1, embed_dim), jnp.float32) * 0.02
        self.layers = []
        for _ in range(depth):
            wqkv, bqkv = _init_linear(next(keys), embed_dim, 3 * embed_dim)
            wo, bo = _init_linear(next(keys), embed_dim, embed_dim)
            w1, b1 = _init_linear(next(keys), embed_dim, mlp_dim)
            w2, b2 = _init_linear(next(keys), mlp_dim, embed_dim)
            self.layers.append(dict(
                wqkv=wqkv, bqkv=bqkv, wo=wo, bo=bo, w1=w1, b1=b1, w2=w2, b2=b2,
                ln1_g=jnp.ones((embed_dim,), jnp.float32),
                ln1_b=jnp.zeros((embed_dim,), jnp.float32),
                ln2_g=jnp.ones((embed_dim,), jnp.float32),
                ln2_b=jnp.zeros((embed_dim,), jnp.float32)))
        self.norm_g = jnp.ones((embed_dim,), jnp.float32)
        self.norm_b = jnp.zeros((embed_dim,), jnp.float32)
        self.fc = Identity()
        self.head = Identity()

    def __call__(self, x):
        B, C, H, W = x.shape
        assert H % self.patch_size == 0 and W % self.patch_size == 0
        patches = _patchify(x, self.patch_size)              # (B, N, p*p*C) glue
        N = patches.shape[1]
        s_real = N + 1
        s_pad = ((s_real + 7) // 8) * 8                      # pad sublane dim once
        pos = _sinusoid_pos_embed(s_real, self.embed_dim)
        tokens = embed_tokens(patches, self.patch_w, self.patch_b,
                              self.cls_token, pos, s_pad)
        for layer in self.layers:
            tokens = encoder_layer(tokens, layer, self.n_heads, s_real)
        cls = tokens[:, 0, :]                                # CLS token (glue slice)
        feats = layernorm(cls, self.norm_g, self.norm_b)     # backbone final norm
        return self.head(self.fc(feats))                     # identities (wrapper-set)


class PallasDINOHead:
    def __init__(self, key, in_dim=128, hidden_dim=256, bottleneck_dim=128, out_dim=256):
        k1, k2, k3, k4 = jax.random.split(key, 4)
        w1, b1 = _init_linear(k1, in_dim, hidden_dim)
        w2, b2 = _init_linear(k2, hidden_dim, hidden_dim)
        w3, b3 = _init_linear(k3, hidden_dim, bottleneck_dim)
        v = jax.random.normal(k4, (bottleneck_dim, out_dim), jnp.float32) * 0.02
        # weight_norm with g == 1: normalize each output column (per output unit).
        w_last = v / (jnp.linalg.norm(v, axis=0, keepdims=True) + 1e-12)
        self.params = dict(w1=w1, b1=b1, w2=w2, b2=b2, w3=w3, b3=b3, w_last=w_last)

    def __call__(self, x):
        return head_forward(x, self.params)


# ---------------------------------------------------------------------------
# MultiCropWrapper (the module being implemented)
# ---------------------------------------------------------------------------

class MultiCropWrapperPallas:
    """Run the backbone once per group of consecutive same-resolution crops,
    concatenate the features, then run the head on the concatenation."""

    def __init__(self, backbone, head):
        # mirror: backbone.fc, backbone.head = nn.Identity(), nn.Identity()
        backbone.fc = Identity()
        backbone.head = Identity()
        self.backbone = backbone
        self.head = head

    def __call__(self, x):
        if not isinstance(x, (list, tuple)):
            x = [x]
        # torch.cumsum(torch.unique_consecutive([inp.shape[-1] ...]).counts, 0)
        # -> shapes are static under JAX, so compute the group boundaries in Python.
        resolutions = [inp.shape[-1] for inp in x]
        idx_crops = []
        i = 0
        while i < len(resolutions):
            j = i
            while j < len(resolutions) and resolutions[j] == resolutions[i]:
                j += 1
            idx_crops.append(j)
            i = j
        start_idx = 0
        outputs = []
        for end_idx in idx_crops:
            _out = self.backbone(jnp.concatenate(x[start_idx:end_idx], axis=0))
            if isinstance(_out, tuple):
                _out = _out[0]
            outputs.append(_out)
            start_idx = end_idx
        output = jnp.concatenate(outputs, axis=0)
        return self.head(output)


if __name__ == "__main__":
    key = jax.random.PRNGKey(0)
    k_bb, k_head, kc0, kc1, kc2, kc3 = jax.random.split(key, 6)

    backbone = PallasViTBackbone(k_bb, patch_size=4, in_chans=3, embed_dim=128,
                                 depth=2, n_heads=4, mlp_dim=256)
    head = PallasDINOHead(k_head, in_dim=128, hidden_dim=256,
                          bottleneck_dim=128, out_dim=256)
    model = MultiCropWrapperPallas(backbone, head)

    # DINO-style multi-crop list: 2 "global" 32x32 crops and 2 "local" 16x16 crops,
    # batch 2 each -> two resolution groups of batched size 4, head sees 8 rows.
    crops = [
        jax.random.normal(kc0, (2, 3, 32, 32), jnp.float32),
        jax.random.normal(kc1, (2, 3, 32, 32), jnp.float32),
        jax.random.normal(kc2, (2, 3, 16, 16), jnp.float32),
        jax.random.normal(kc3, (2, 3, 16, 16), jnp.float32),
    ]

    out = model(crops)
    out = jax.block_until_ready(out)
    assert out.shape == (8, 256), out.shape
    assert bool(jnp.all(jnp.isfinite(out)))
    print("KERNEL_OK")
</pallas_src>

<mosaic_0001>
module attributes {stable_mosaic.version = 11 : i64} {
  func.func @_embed_kernel(%arg0: i32, %arg1: memref<1x64x48xf32, #tpu.memory_space<vmem>>, %arg2: memref<48x128xf32, #tpu.memory_space<vmem>>, %arg3: memref<1x128xf32, #tpu.memory_space<vmem>>, %arg4: memref<1x128xf32, #tpu.memory_space<vmem>>, %arg5: memref<65x128xf32, #tpu.memory_space<vmem>>, %arg6: memref<1x72x128xf32, #tpu.memory_space<vmem>>) attributes {dimension_semantics = [#tpu.dimension_semantics<parallel>], iteration_bounds = array<i64: 4>, scalar_prefetch = 0 : i64, scratch_operands = 0 : i64, tpu.core_type = #tpu.core_type<tc>, window_params = [{transform_indices = @transform_0, window_bounds = array<i64: 1, 64, 48>}, {pipeline_mode = #tpu.pipeline_mode<synchronous>, transform_indices = @transform_1, window_bounds = array<i64: 48, 128>}, {pipeline_mode = #tpu.pipeline_mode<synchronous>, transform_indices = @transform_2, window_bounds = array<i64: 1, 128>}, {pipeline_mode = #tpu.pipeline_mode<synchronous>, transform_indices = @transform_3, window_bounds = array<i64: 1, 128>}, {pipeline_mode = #tpu.pipeline_mode<synchronous>, transform_indices = @transform_4, window_bounds = array<i64: 65, 128>}, {transform_indices = @transform_5, window_bounds = array<i64: 1, 72, 128>}]} {
    %c0 = arith.constant 0 : index
    %c0_0 = arith.constant 0 : index
    %c0_1 = arith.constant 0 : index
    %0 = vector.load %arg1[%c0, %c0_0, %c0_1] : memref<1x64x48xf32, #tpu.memory_space<vmem>>, vector<1x64x48xf32>
    %1 = vector.shape_cast %0 : vector<1x64x48xf32> to vector<64x48xf32>
    %2 = arith.truncf %1 : vector<64x48xf32> to vector<64x48xbf16>
    %c0_2 = arith.constant 0 : index
    %c0_3 = arith.constant 0 : index
    %3 = vector.load %arg2[%c0_2, %c0_3] : memref<48x128xf32, #tpu.memory_space<vmem>>, vector<48x128xf32>
    %4 = arith.truncf %3 : vector<48x128xf32> to vector<48x128xbf16>
    %cst = arith.constant dense<0.000000e+00> : vector<64x128xf32>
    %5 = tpu.matmul %2, %4, %cst {dimension_numbers = #tpu.dot_dimension_numbers<[1], [0], [0], [1], [0, 0, 1, 1], [], []>} : vector<64x48xbf16>, vector<48x128xbf16>, vector<64x128xf32> -> vector<64x128xf32>
    %c0_4 = arith.constant 0 : index
    %c0_5 = arith.constant 0 : index
    %6 = vector.load %arg3[%c0_4, %c0_5] : memref<1x128xf32, #tpu.memory_space<vmem>>, vector<1x128xf32>
    %7 = vector.broadcast %6 : vector<1x128xf32> to vector<64x128xf32>
    %8 = arith.addf %5, %7 : vector<64x128xf32>
    %c0_6 = arith.constant 0 : index
    %c0_7 = arith.constant 0 : index
    %9 = vector.load %arg4[%c0_6, %c0_7] : memref<1x128xf32, #tpu.memory_space<vmem>>, vector<1x128xf32>
    %10 = tpu.concatenate %9, %8 in 0 : vector<1x128xf32>, vector<64x128xf32> -> vector<65x128xf32>
    %c0_8 = arith.constant 0 : index
    %c0_9 = arith.constant 0 : index
    %11 = vector.load %arg5[%c0_8, %c0_9] : memref<65x128xf32, #tpu.memory_space<vmem>>, vector<65x128xf32>
    %12 = arith.addf %10, %11 : vector<65x128xf32>
    %cst_10 = arith.constant 0.000000e+00 : f32
    %13 = vector.broadcast %cst_10 : f32 to vector<7x128xf32>
    %14 = tpu.concatenate %12, %13 in 0 : vector<65x128xf32>, vector<7x128xf32> -> vector<72x128xf32>
    %c0_11 = arith.constant 0 : index
    %c0_12 = arith.constant 0 : index
    %c0_13 = arith.constant 0 : index
    %15 = vector.load %arg6[%c0_11, %c0_12, %c0_13] : memref<1x72x128xf32, #tpu.memory_space<vmem>>, vector<1x72x128xf32>
    %16 = vector.shape_cast %15 : vector<1x72x128xf32> to vector<72x128xf32>
    %17 = vector.shape_cast %14 : vector<72x128xf32> to vector<1x72x128xf32>
    tpu.vector_store %arg6[%c0_11, %c0_12, %c0_13], %17 {strides = array<i32>} : memref<1x72x128xf32, #tpu.memory_space<vmem>>, vector<1x72x128xf32>,
    return
  }
  func.func @transform_0(%arg0: i32) -> (i32, i32, i32) {
    %c0_i32 = arith.constant 0 : i32
    %c0_i32_0 = arith.constant 0 : i32
    %c0_i32_1 = arith.constant 0 : i32
    return %arg0, %c0_i32, %c0_i32_0 : i32, i32, i32
  }
  func.func @transform_1(%arg0: i32) -> (i32, i32) {
    %c0_i32 = arith.constant 0 : i32
    %c0_i32_0 = arith.constant 0 : i32
    %c0_i32_1 = arith.constant 0 : i32
    return %c0_i32, %c0_i32_0 : i32, i32
  }
  func.func @transform_2(%arg0: i32) -> (i32, i32) {
    %c0_i32 = arith.constant 0 : i32
    %c0_i32_0 = arith.constant 0 : i32
    %c0_i32_1 = arith.constant 0 : i32
    return %c0_i32, %c0_i32_0 : i32, i32
  }
  func.func @transform_3(%arg0: i32) -> (i32, i32) {
    %c0_i32 = arith.constant 0 : i32
    %c0_i32_0 = arith.constant 0 : i32
    %c0_i32_1 = arith.constant 0 : i32
    return %c0_i32, %c0_i32_0 : i32, i32
  }
  func.func @transform_4(%arg0: i32) -> (i32, i32) {
    %c0_i32 = arith.constant 0 : i32
    %c0_i32_0 = arith.constant 0 : i32
    %c0_i32_1 = arith.constant 0 : i32
    return %c0_i32, %c0_i32_0 : i32, i32
  }
  func.func @transform_5(%arg0: i32) -> (i32, i32, i32) {
    %c0_i32 = arith.constant 0 : i32
    %c0_i32_0 = arith.constant 0 : i32
    %c0_i32_1 = arith.constant 0 : i32
    return %arg0, %c0_i32, %c0_i32_0 : i32, i32, i32
  }
}

</mosaic_0001>

<llo_original>
// kernel: tpu_custom_call.1
$region0: #{tpu_custom_call.1}
  #allocation0 [shape = 'u32[]', space=smem, size = 0x4, offset = 0x4, fixed_abs, tag = 'smem constant byte address 0x4 - core index']
  #allocation1 [shape = 'u32[144,128]{1,0:T(1,128)}', space=vmem, size = 0x12000, scoped, tag = 'internal scratch']
  %s0 = inlined_call_operand.vmem [shape: f32[4,64,48], index: 0, kind: input, shape index: {}]
  %s1 = inlined_call_operand.vmem [shape: f32[48,128], index: 1, kind: input, shape index: {}]
  %s2 = inlined_call_operand.vmem [shape: f32[1,128], index: 2, kind: input, shape index: {}]
  %s3 = inlined_call_operand.vmem [shape: f32[1,128], index: 3, kind: input, shape index: {}]
  %s4 = inlined_call_operand.vmem [shape: f32[65,128], index: 4, kind: input, shape index: {}]
  %s5 = inlined_call_operand.hbm [shape: f32[4,72,128], index: 5, kind: output, shape index: {}]
  %s6 = sld [smem:[#allocation0]]
  $region53: #{tpu_custom_call.1} parent=0
    _
  %s8 = ssub.s32 1, %s6
  %s9 = scalar_select 0, %s8, %s6
  $region1: #{tpu_custom_call.1} parent=0
    #allocation2 [shape = 'u8[73728]{0}', space=vmem, size = 0x12000, scoped, tag = 'output window, operand 0']
    #allocation3 [shape = 's32[2]{0}', space=sflag, size = 0x8, scoped, tag = 'scoped memory for tpu_custom_call.1']
    %10 = vsyncpa [#allocation3], 0
    %s11 = scalar_lea.sflag [#allocation3], 1
    %12 = vsyncpa %s11, 0
    loop: start=0, step=1, limit=6
    $region2: #{tpu_custom_call.1} parent=1 // loop_pre_header
      _
    $region3: #{tpu_custom_call.1} parent=1 // loop_header
      %s14 = sphi 0, %s18
      %p15 = scmp.ge.s32.totalorder %s14, 6
      %s24 = sphi 0, %s26
      %s27 = sphi 0, %s24
      %s28 = sphi 0, %s27
      %s44 = sphi 0, %s28
      %s48 = sphi 0, %s48
      %s50 = sphi 0, %s48
      %s51 = sphi 0, %s50
      %s65 = sphi 0, %s51
      %s69 = sphi 0, %s69
      %s71 = sphi 0, %s69
      %s72 = sphi 0, %s71
      %s86 = sphi 0, %s72
      %s90 = sphi 0, %s90
      %s92 = sphi 0, %s90
      %s93 = sphi 0, %s92
      %s107 = sphi 0, %s93
      %s111 = sphi 0, %s111
      %s113 = sphi 0, %s111
      %s114 = sphi 0, %s113
      %s128 = sphi 0, %s114
      %s134 = sphi 0, %s136
      %s137 = sphi 0, %s134
      %s138 = sphi 0, %s137
      %s154 = sphi 0, %s138
    $region4: #{tpu_custom_call.1} parent=1 // loop_header_branch
      %17 = sbr.rel (%p15) target = $region8
    $region5: #{tpu_custom_call.1} parent=1 // loop_body
      %s19 = ssub.s32 %s14, 1
      %s20 = ssub.s32 %s14, 2
      %s21 = sadd.s32 %s14, 1
      %s22 = ssub.s32 %s14, %s21
      %p23 = scmp.eq.s32.totalorder %s22, 0
      %s25 = sadd.s32 %s24, 1
      %s26 = scalar_select %p23, %s24, %s25
      %p29 = pneg %p23
      %p30 = scmp.eq.s32.totalorder %s14, 3
      %p31 = por %p29, %p30
      %p32 = scmp.ne.s32.totalorder %s24, %s27
      %p33 = scmp.eq.s32.totalorder %s14, 0
      %p34 = por %p32, %p33
      %p35 = scmp.ne.s32.totalorder %s24, %s27
      %p36 = scmp.eq.s32.totalorder %s19, 3
      %p37 = por %p35, %p36
      %p38 = scmp.ne.s32.totalorder %s27, %s28
      %p39 = scmp.eq.s32.totalorder %s19, 0
      %p40 = por %p38, %p39
      %p41 = scmp.ne.s32.totalorder %s27, %s28
      %p42 = scmp.eq.s32.totalorder %s20, 3
      %p43 = por %p41, %p42
      %p45 = scmp.ne.s32.totalorder %s28, %s44
      %p46 = scmp.eq.s32.totalorder %s20, 0
      %p47 = por %p45, %p46
      %s49 = sadd.s32 %s48, 1
      %p52 = scmp.eq.s32.totalorder %s14, 3
      %p53 = scmp.ne.s32.totalorder %s48, %s50
      %p54 = scmp.eq.s32.totalorder %s14, 0
      %p55 = por %p53, %p54
      %p56 = scmp.ne.s32.totalorder %s48, %s50
      %p57 = scmp.eq.s32.totalorder %s19, 3
      %p58 = por %p56, %p57
      %p59 = scmp.ne.s32.totalorder %s50, %s51
      %p60 = scmp.eq.s32.totalorder %s19, 0
      %p61 = por %p59, %p60
      %p62 = scmp.ne.s32.totalorder %s50, %s51
      %p63 = scmp.eq.s32.totalorder %s20, 3
      %p64 = por %p62, %p63
      %p66 = scmp.ne.s32.totalorder %s51, %s65
      %p67 = scmp.eq.s32.totalorder %s20, 0
      %p68 = por %p66, %p67
      %s70 = sadd.s32 %s69, 1
      %p73 = scmp.eq.s32.totalorder %s14, 3
      %p74 = scmp.ne.s32.totalorder %s69, %s71
      %p75 = scmp.eq.s32.totalorder %s14, 0
      %p76 = por %p74, %p75
      %p77 = scmp.ne.s32.totalorder %s69, %s71
      %p78 = scmp.eq.s32.totalorder %s19, 3
      %p79 = por %p77, %p78
      %p80 = scmp.ne.s32.totalorder %s71, %s72
      %p81 = scmp.eq.s32.totalorder %s19, 0
      %p82 = por %p80, %p81
      %p83 = scmp.ne.s32.totalorder %s71, %s72
      %p84 = scmp.eq.s32.totalorder %s20, 3
      %p85 = por %p83, %p84
      %p87 = scmp.ne.s32.totalorder %s72, %s86
      %p88 = scmp.eq.s32.totalorder %s20, 0
      %p89 = por %p87, %p88
      %s91 = sadd.s32 %s90, 1
      %p94 = scmp.eq.s32.totalorder %s14, 3
      %p95 = scmp.ne.s32.totalorder %s90, %s92
      %p96 = scmp.eq.s32.totalorder %s14, 0
      %p97 = por %p95, %p96
      %p98 = scmp.ne.s32.totalorder %s90, %s92
      %p99 = scmp.eq.s32.totalorder %s19, 3
      %p100 = por %p98, %p99
      %p101 = scmp.ne.s32.totalorder %s92, %s93
      %p102 = scmp.eq.s32.totalorder %s19, 0
      %p103 = por %p101, %p102
      %p104 = scmp.ne.s32.totalorder %s92, %s93
      %p105 = scmp.eq.s32.totalorder %s20, 3
      %p106 = por %p104, %p105
      %p108 = scmp.ne.s32.totalorder %s93, %s107
      %p109 = scmp.eq.s32.totalorder %s20, 0
      %p110 = por %p108, %p109
      %s112 = sadd.s32 %s111, 1
      %p115 = scmp.eq.s32.totalorder %s14, 3
      %p116 = scmp.ne.s32.totalorder %s111, %s113
      %p117 = scmp.eq.s32.totalorder %s14, 0
      %p118 = por %p116, %p117
      %p119 = scmp.ne.s32.totalorder %s111, %s113
      %p120 = scmp.eq.s32.totalorder %s19, 3
      %p121 = por %p119, %p120
      %p122 = scmp.ne.s32.totalorder %s113, %s114
      %p123 = scmp.eq.s32.totalorder %s19, 0
      %p124 = por %p122, %p123
      %p125 = scmp.ne.s32.totalorder %s113, %s114
      %p126 = scmp.eq.s32.totalorder %s20, 3
      %p127 = por %p125, %p126
      %p129 = scmp.ne.s32.totalorder %s114, %s128
      %p130 = scmp.eq.s32.totalorder %s20, 0
      %p131 = por %p129, %p130
      %s132 = ssub.s32 %s14, %s21
      %p133 = scmp.eq.s32.totalorder %s132, 0
      %s135 = sadd.s32 %s134, 1
      %s136 = scalar_select %p133, %s134, %s135
      %p139 = pneg %p133
      %p140 = scmp.eq.s32.totalorder %s14, 3
      %p141 = por %p139, %p140
      %p142 = scmp.ne.s32.totalorder %s134, %s137
      %p143 = scmp.eq.s32.totalorder %s14, 0
      %p144 = por %p142, %p143
      %p145 = scmp.ne.s32.totalorder %s134, %s137
      %p146 = scmp.eq.s32.totalorder %s19, 3
      %p147 = por %p145, %p146
      %p148 = scmp.ne.s32.totalorder %s137, %s138
      %p149 = scmp.eq.s32.totalorder %s19, 0
      %p150 = por %p148, %p149
      %p151 = scmp.ne.s32.totalorder %s137, %s138
      %p152 = scmp.eq.s32.totalorder %s20, 3
      %p153 = por %p151, %p152
      %p155 = scmp.ne.s32.totalorder %s138, %s154
      %p156 = scmp.eq.s32.totalorder %s20, 0
      %p157 = por %p155, %p156
      %p158 = scmp.le.s32.totalorder 1, %s14
      %p159 = scmp.lt.s32.totalorder %s14, 5
      %p160 = pnand %p158, %p159
      %p161 = pneg %p160
      // Predicated region
      $region9: #{tpu_custom_call.1} parent=5 // pred_check
        _
      $region10: #{tpu_custom_call.1} parent=5 // pred_check_branch
        %163 = sbr.rel (%p160) target = $region12
      $region11: #{tpu_custom_call.1} parent=5 // pred_region
        %s164 = ssub.s32 %s14, 1
        // Predicated region
        $region13: #{tpu_custom_call.1} parent=11 // pred_check
          %p165 = pneg %p61
        $region14: #{tpu_custom_call.1} parent=11 // pred_check_branch
          %167 = sbr.rel (%p165) target = $region16
        $region15: #{tpu_custom_call.1} parent=11 // pred_region
          _
        $region16: #{tpu_custom_call.1} parent=11 // pred_fallthru
          _
        // Predicated region
        $region17: #{tpu_custom_call.1} parent=11 // pred_check
          %p168 = pneg %p82
        $region18: #{tpu_custom_call.1} parent=11 // pred_check_branch
          %170 = sbr.rel (%p168) target = $region20
        $region19: #{tpu_custom_call.1} parent=11 // pred_region
          _
        $region20: #{tpu_custom_call.1} parent=11 // pred_fallthru
          _
        // Predicated region
        $region21: #{tpu_custom_call.1} parent=11 // pred_check
          %p171 = pneg %p103
        $region22: #{tpu_custom_call.1} parent=11 // pred_check_branch
          %173 = sbr.rel (%p171) target = $region24
        $region23: #{tpu_custom_call.1} parent=11 // pred_region
          _
        $region24: #{tpu_custom_call.1} parent=11 // pred_fallthru
          _
        // Predicated region
        $region25: #{tpu_custom_call.1} parent=11 // pred_check
          %p174 = pneg %p124
        $region26: #{tpu_custom_call.1} parent=11 // pred_check_branch
          %176 = sbr.rel (%p174) target = $region28
        $region27: #{tpu_custom_call.1} parent=11 // pred_region
          _
        $region28: #{tpu_custom_call.1} parent=11 // pred_fallthru
          _
      $region12: #{tpu_custom_call.1} parent=5 // pred_fallthru
        _
      %p177 = scmp.lt.s32.totalorder %s14, 4
      // Predicated region
      $region29: #{tpu_custom_call.1} parent=5 // pred_check
        %p178 = pneg %p177
      $region30: #{tpu_custom_call.1} parent=5 // pred_check_branch
        %180 = sbr.rel (%p178) target = $region32
      $region31: #{tpu_custom_call.1} parent=5 // pred_region
        // Predicated region
        $region33: #{tpu_custom_call.1} parent=31 // pred_check
          %p181 = pneg %p34
        $region34: #{tpu_custom_call.1} parent=31 // pred_check_branch
          %183 = sbr.rel (%p181) target = $region36
        $region35: #{tpu_custom_call.1} parent=31 // pred_region
          %p184 = scmp.lt.s32.totalorder %s14, 3
          %s185 = scalar_select %p184, %s14, 3
          %s186 = smul.addr %s185, 8
          %s187 = smul.addr %s186, 8
          %s188 = scalar_lea.vmem %s0, %s187
        $region36: #{tpu_custom_call.1} parent=31 // pred_fallthru
          _
      $region32: #{tpu_custom_call.1} parent=5 // pred_fallthru
        _
      %p189 = scmp.le.s32.totalorder 1, %s14
      %p190 = scmp.lt.s32.totalorder %s14, 5
      %p191 = pnand %p189, %p190
      %p192 = pneg %p191
      // Predicated region
      $region37: #{tpu_custom_call.1} parent=5 // pred_check
        _
      $region38: #{tpu_custom_call.1} parent=5 // pred_check_branch
        %194 = sbr.rel (%p191) target = $region40
      $region39: #{tpu_custom_call.1} parent=5 // pred_region
        %s195 = ssub.s32 %s14, 1
        %p196 = scmp.lt.s32.totalorder %s19, 3
        %s197 = scalar_select %p196, %s19, 3
        %s198 = smul.addr %s197, 8
        %s199 = smul.addr %s198, 8
        %s200 = scalar_lea.vmem %s0, %s199
        %p201 = pneg %p40
        %p202 = pneg %p37
        %p203 = pneg %p61
        %p204 = pneg %p58
        %p205 = pneg %p82
        %p206 = pneg %p79
        %p207 = pneg %p103
        %p208 = pneg %p100
        %p209 = pneg %p124
        %p210 = pneg %p121
        %p211 = pneg %p150
        %p212 = pneg %p147
        %s213 = sand.u32 %s137, 1
        %s214 = scalar_lea.sflag [#allocation3], %s213
        %s215 = sand.u32 %s137, 1
        %s216 = smul.addr %s215, 72
        %s217 = scalar_lea.vmem [#allocation2], %s216
        %p218 = scmp.lt.s32.totalorder %s19, 3
        %s219 = scalar_select %p218, %s19, 3
        %s220 = smul.addr %s219, 8
        %s221 = smul.addr %s220, 8
        %s222 = scalar_lea.vmem %s0, %s221
        %v224 = vld [vmem:[%s222] sm:$0xff]
        %v225 = vld [vmem:[%s222 + $0x8] sm:$0xff]
        %v226 = vld [vmem:[%s222 + $0x10] sm:$0xff]
        %v227 = vld [vmem:[%s222 + $0x18] sm:$0xff]
        %v228 = vld [vmem:[%s222 + $0x20] sm:$0xff]
        %v229 = vld [vmem:[%s222 + $0x28] sm:$0xff]
        %v230 = vld [vmem:[%s222 + $0x30] sm:$0xff]
        %v231 = vld [vmem:[%s222 + $0x38] sm:$0xff]
        %v232 = vpack.c.bf16 %v225, %v224
        %v233 = vpack.c.bf16 %v227, %v226
        %v234 = vpack.c.bf16 %v229, %v228
        %v235 = vpack.c.bf16 %v231, %v230
        %v236 = vld [vmem:[%s1] sm:$0xff]
        %v237 = vld [vmem:[%s1 + $0x8] sm:$0xff]
        %v238 = vld [vmem:[%s1 + $0x10] sm:$0xff]
        %v239 = vld [vmem:[%s1 + $0x18] sm:$0xff]
        %v240 = vld [vmem:[%s1 + $0x20] sm:$0xff]
        %v241 = vld [vmem:[%s1 + $0x28] sm:$0xff]
        %v242 = vpack.c.bf16 %v237, %v236
        %v243 = vpack.c.bf16 %v239, %v238
        %v244 = vpack.c.bf16 %v241, %v240
        %v245 = vld [vmem:[%s2] sm:$0x1]
        %v247 = vlaneseq
        %v248 = vshrl.u32 %v247, 7
        %v249 = vsub.s32 0, %v248
        %v250 = vrot.slane %v245, %v249
        %vm252 = vcmask 392192
        %v254 = vsel %vm252, %v232, 0
        %v257 = vsel %vm252, %v233, 0
        %v260 = vsel %vm252, %v234, 0
        %v263 = vsel %vm252, %v235, 0
        %265 = vmatprep.subr.bf16.mxu0 0
        %266 = vmatpush1.bf16.msra.mxu0 %v242
        %267 = vmatprep.subr.bf16.mxu0 0
        %268 = vmatpush1.bf16.msra.mxu0 %v243
        %269 = vmatprep.subr.bf16.mxu0 0
        %270 = vmatpush1.bf16.msra.mxu0 %v244
        %271 = vmatprep.subr.bf16.mxu0 0
        %272 = vmatpush1.bf16.msra.mxu0 0
        %273 = vmatprep.subr.bf16.mxu0 0
        %274 = vmatpush1.bf16.msra.mxu0 0
        %275 = vmatprep.subr.bf16.mxu0 0
        %276 = vmatpush1.bf16.msra.mxu0 0
        %277 = vmatprep.subr.bf16.mxu0 0
        %278 = vmatpush1.bf16.msra.mxu0 0
        %279 = vmatprep.subr.bf16.mxu0 0
        %280 = vmatpush1.bf16.msra.mxu0 0
        %281 = vmatprep.subr.bf16.mxu0 0
        %282 = vmatpush1.bf16.msra.mxu0 0
        %283 = vmatprep.subr.bf16.mxu0 0
        %284 = vmatpush1.bf16.msra.mxu0 0
        %285 = vmatprep.subr.bf16.mxu0 0
        %286 = vmatpush1.bf16.msra.mxu0 0
        %287 = vmatprep.subr.bf16.mxu0 0
        %288 = vmatpush1.bf16.msra.mxu0 0
        %289 = vmatprep.subr.bf16.mxu0 0
        %290 = vmatpush1.bf16.msra.mxu0 0
        %291 = vmatprep.subr.bf16.mxu0 0
        %292 = vmatpush1.bf16.msra.mxu0 0
        %293 = vmatprep.subr.bf16.mxu0 0
        %294 = vmatpush1.bf16.msra.mxu0 0
        %295 = vmatprep.subr.bf16.mxu0 0
        %296 = vmatpush1.bf16.msra.mxu0 0
        %297 = vmatprep.mubr.bf16.mxu0 0
        %298 = vmatmul.mubr.bf16.gmra.mrb[0].mxu0 %v254
        %v299 = vpop.f32.mrb[0].mxu0
        %v300 = vadd.f32 %v250, %v299
        %v301 = vpop.f32.mrb[0].mxu0
        %v302 = vpop.f32.mrb[0].mxu0
        %v303 = vadd.f32 %v250, %v302
        %v304 = vpop.f32.mrb[0].mxu0
        %305 = vmatprep.mubr.bf16.mxu0 0
        %306 = vmatmul.mubr.bf16.gmra.mrb[0].mxu0 %v257
        %v307 = vpop.f32.mrb[0].mxu0
        %v308 = vadd.f32 %v250, %v307
        %v309 = vpop.f32.mrb[0].mxu0
        %v310 = vpop.f32.mrb[0].mxu0
        %v311 = vadd.f32 %v250, %v310
        %v312 = vpop.f32.mrb[0].mxu0
        %313 = vmatprep.mubr.bf16.mxu0 0
        %314 = vmatmul.mubr.bf16.gmra.mrb[0].mxu0 %v260
        %v315 = vpop.f32.mrb[0].mxu0
        %v316 = vadd.f32 %v250, %v315
        %v317 = vpop.f32.mrb[0].mxu0
        %v318 = vpop.f32.mrb[0].mxu0
        %v319 = vadd.f32 %v250, %v318
        %v320 = vpop.f32.mrb[0].mxu0
        %321 = vmatprep.mubr.bf16.mxu0 0
        %322 = vmatmul.mubr.bf16.gmra.mrb[0].mxu0 %v263
        %v323 = vpop.f32.mrb[0].mxu0
        %v324 = vadd.f32 %v250, %v323
        %v325 = vpop.f32.mrb[0].mxu0
        %v326 = vpop.f32.mrb[0].mxu0
        %v327 = vadd.f32 %v250, %v326
        %v328 = vpop.f32.mrb[0].mxu0
        %329 = vdwg.mxu0
        %v330 = vld [vmem:[%s3] sm:$0x1]
        %vm339 = vcmask 1040384
        %v340 = vrot.slane %v300, 7
        %v341 = vrot.slane %v303, 7
        %v342 = vsel %vm339, %v340, %v341
        %v343 = vrot.slane %v308, 7
        %v344 = vsel %vm339, %v341, %v343
        %v345 = vrot.slane %v311, 7
        %v346 = vsel %vm339, %v343, %v345
        %v347 = vrot.slane %v316, 7
        %v348 = vsel %vm339, %v345, %v347
        %v349 = vrot.slane %v319, 7
        %v350 = vsel %vm339, %v347, %v349
        %v351 = vrot.slane %v324, 7
        %v352 = vsel %vm339, %v349, %v351
        %v353 = vrot.slane %v327, 7
        %v354 = vsel %vm339, %v351, %v353
        %v364 = vsel %vm339, %v330, %v340
        %v365 = vld [vmem:[%s4] sm:$0xff]
        %v366 = vld [vmem:[%s4 + $0x8] sm:$0xff]
        %v367 = vld [vmem:[%s4 + $0x10] sm:$0xff]
        %v368 = vld [vmem:[%s4 + $0x18] sm:$0xff]
        %v369 = vld [vmem:[%s4 + $0x20] sm:$0xff]
        %v370 = vld [vmem:[%s4 + $0x28] sm:$0xff]
        %v371 = vld [vmem:[%s4 + $0x30] sm:$0xff]
        %v372 = vld [vmem:[%s4 + $0x38] sm:$0xff]
        %v373 = vld [vmem:[%s4 + $0x40] sm:$0x1]
        %v374 = vadd.f32 %v364, %v365
        %v375 = vadd.f32 %v342, %v366
        %v376 = vadd.f32 %v344, %v367
        %v377 = vadd.f32 %v346, %v368
        %v378 = vadd.f32 %v348, %v369
        %v379 = vadd.f32 %v350, %v370
        %v380 = vadd.f32 %v352, %v371
        %v381 = vadd.f32 %v354, %v372
        %v382 = vadd.f32 %v353, %v373
        %v383 = vsel %vm339, %v382, 0.0
        %384 = vst [vmem:[%s217] sm:$0xff] %v374
        %385 = vst [vmem:[%s217 + $0x8] sm:$0xff] %v375
        %386 = vst [vmem:[%s217 + $0x10] sm:$0xff] %v376
        %387 = vst [vmem:[%s217 + $0x18] sm:$0xff] %v377
        %388 = vst [vmem:[%s217 + $0x20] sm:$0xff] %v378
        %389 = vst [vmem:[%s217 + $0x28] sm:$0xff] %v379
        %390 = vst [vmem:[%s217 + $0x30] sm:$0xff] %v380
        %391 = vst [vmem:[%s217 + $0x38] sm:$0xff] %v381
        %392 = vst [vmem:[%s217 + $0x40] sm:$0xff] %v383
        %s393 = sand.u32 %s137, 1
        %s394 = scalar_lea.sflag [#allocation3], %s393
        %s395 = sand.u32 %s137, 1
        %s396 = smul.addr %s395, 72
        %s397 = scalar_lea.vmem [#allocation2], %s396
        // Predicated region
        $region41: #{tpu_custom_call.1} parent=39 // pred_check
          %p398 = pneg %p147
        $region42: #{tpu_custom_call.1} parent=39 // pred_check_branch
          %400 = sbr.rel (%p398) target = $region44
        $region43: #{tpu_custom_call.1} parent=39 // pred_region
          %s402 = ssub.s32 1152, 1152
          %403 = vsyncadd %s394, %s402
          %s404 = smul.addr %s19, 9
          %s405 = smul.addr %s404, 128
          %s406 = scalar_lea.hbm %s5, %s405
          %s407 = sshll.u32 %s397, 4
          %s408 = int_to_ptr.vmem [resolvable:$true] %s407
          %413 = dma.vmem_to_hbm [thread:$0]  %s408, 1152, %s406, %s394, 128, 128, 8
        $region44: #{tpu_custom_call.1} parent=39 // pred_fallthru
          _
      $region40: #{tpu_custom_call.1} parent=5 // pred_fallthru
        _
      %p414 = scmp.le.s32.totalorder 2, %s14
      // Predicated region
      $region45: #{tpu_custom_call.1} parent=5 // pred_check
        %p415 = pneg %p414
      $region46: #{tpu_custom_call.1} parent=5 // pred_check_branch
        %417 = sbr.rel (%p415) target = $region48
      $region47: #{tpu_custom_call.1} parent=5 // pred_region
        %s418 = ssub.s32 %s14, 2
        // Predicated region
        $region49: #{tpu_custom_call.1} parent=47 // pred_check
          %p419 = pneg %p153
        $region50: #{tpu_custom_call.1} parent=47 // pred_check_branch
          %421 = sbr.rel (%p419) target = $region52
        $region51: #{tpu_custom_call.1} parent=47 // pred_region
          %s422 = sand.u32 %s138, 1
          %s423 = scalar_lea.sflag [#allocation3], %s422
          %s424 = sand.u32 %s138, 1
          %s425 = smul.addr %s424, 72
          %s426 = scalar_lea.vmem [#allocation2], %s425
          %427 = dma.done %s423, 1152
        $region52: #{tpu_custom_call.1} parent=47 // pred_fallthru
          _
      $region48: #{tpu_custom_call.1} parent=5 // pred_fallthru
        _
    $region6: #{tpu_custom_call.1} parent=1 // loop_footer
      %s18 = sadd.s32 1, %s14
    $region7: #{tpu_custom_call.1} parent=1 // loop_footer_branch
      %13 = sbr.rel target = $region3
    $region8: #{tpu_custom_call.1} parent=1 // loop_exit
      _
    %428 = vsyncpa [#allocation3], 1
    %s429 = scalar_lea.sflag [#allocation3], 1
    %430 = vsyncpa %s429, 1

</llo_original>
